<compile_context>
chip_gen: v7x
topology: tpu7x:2x2x1
jax: 0.10.0
libtpu: 0.0.40
codegen_flags: <defaults>
</compile_context>

<pallas_src>
import functools
import math

import jax
import jax.numpy as jnp
from jax.experimental import pallas as pl
from jax.experimental.pallas import tpu as pltpu

LARGE_NUM = 1000000000.0
_MIB = 1 << 20


# --------------------------------------------------------------------------
# Prologue kernel: zn = (z / ||z||) * (1/sqrt(T)) -> bf16, padded to dp lanes.
# --------------------------------------------------------------------------
def _l2norm_scale_pad_kernel(z_ref, out_ref, *, inv_sqrt_t, d):
    z = z_ref[...].astype(jnp.float32)                      # (TM, d)
    ssq = jnp.sum(z * z, axis=-1, keepdims=True)            # (TM, 1)
    # Matches torch `x / x.norm(dim=-1, keepdim=True)` (no epsilon: an
    # all-zero row produces NaN, same as the PyTorch module).
    zn = (z * (jnp.float32(inv_sqrt_t) / jnp.sqrt(ssq))).astype(out_ref.dtype)
    dp = out_ref.shape[-1]
    if dp == d:
        out_ref[...] = zn
    else:
        # Zero the lane padding once, then masked-store the real columns.
        out_ref[...] = jnp.zeros(out_ref.shape, out_ref.dtype)
        out_ref[:, :d] = zn


# --------------------------------------------------------------------------
# Main kernel: one (TM, N) logits row-tile per grid step.
# --------------------------------------------------------------------------
def _ntxent_tile_kernel(zn_ref, loss_ref, pred_ref, *,
                        temperature: float, batch_size: int, block_m: int):
    i = pl.program_id(0)
    n = zn_ref.shape[0]

    row0 = pl.multiple_of(i * block_m, block_m)
    zt = zn_ref[pl.ds(row0, block_m), :]                    # (TM, dp) bf16, * 1/sqrt(T)

    # logits = cos_sim / T ; bf16 operands, f32 accumulation on the MXU.
    logits = jax.lax.dot_general(
        zt, zn_ref[...],
        dimension_numbers=(((1,), (1,)), ((), ())),
        preferred_element_type=jnp.float32)                 # (TM, N) f32

    # Single column iota + (TM,1) global row-index vector for the diagonal mask.
    # (Full-width where kept: col_ids is needed for the fused argmax anyway, and
    #  a TM x TM dynamic-update-slice would re-touch the full tile on lowering.)
    col_ids = jax.lax.broadcasted_iota(jnp.int32, (block_m, n), 1)
    row_ids = row0 + jax.lax.broadcasted_iota(jnp.int32, (block_m, 1), 0)
    neg = jnp.float32(LARGE_NUM / temperature)
    logits = jnp.where(col_ids == row_ids, logits - neg, logits)

    # Target logit = cos(z_r, z_{(r+B) mod N}) / T via a paired dot with the
    # partner row block (contiguous because block_m divides B).
    p0 = row0 + batch_size
    part0 = jnp.where(p0 >= n, p0 - n, p0)
    part0 = pl.multiple_of(part0, block_m)
    zp = zn_ref[pl.ds(part0, block_m), :]                   # (TM, dp) bf16
    tgt_logit = jnp.sum(zt.astype(jnp.float32) * zp.astype(jnp.float32),
                        axis=-1, keepdims=True)             # (TM, 1)

    # Per-row softmax cross entropy pieces: lse(row) - logits[row, target].
    mx = jnp.max(logits, axis=-1, keepdims=True)            # (TM, 1)
    lse = mx + jnp.log(jnp.sum(jnp.exp(logits - mx), axis=-1, keepdims=True))
    loss_ref[...] = lse - tgt_logit                         # (TM, 1) per-row loss

    # Fused argmax (first index attaining the row max), reusing col_ids.
    cand = jnp.where(logits >= mx, col_ids, jnp.int32(n))
    pred_ref[...] = jnp.min(cand, axis=-1, keepdims=True).astype(jnp.int32)


# --------------------------------------------------------------------------
# VMEM budgeting (generation aware) and row-tile selection.
# --------------------------------------------------------------------------
def _vmem_budget_bytes():
    """Returns (working_set_budget, vmem_limit) per TPU generation."""
    try:
        cap = int(pltpu.get_tpu_info().vmem_capacity_bytes)
    except Exception:
        cap = 64 * _MIB   # v7x-safe default if the query is unavailable
    # Headroom for Mosaic internal scratch, output double-buffers, per-TC copies.
    budget = min(cap - 12 * _MIB, int(0.85 * cap))   # ~52 MiB @64, ~109 MiB @128
    limit = min(cap - 4 * _MIB, budget + 8 * _MIB)
    return budget, limit


def _choose_block_m(batch_size: int, n: int, d_padded: int,
                    zn_itemsize: int, budget: int):
    candidates = [tm for tm in (1024, 512, 256, 128, 64, 32, 16, 8)
                  if tm <= batch_size and batch_size % tm == 0]
    if not candidates:
        raise ValueError("batch_size must be a multiple of 8 for this kernel")
    zn_bytes = n * d_padded * zn_itemsize            # single-buffered resident RHS
    for tm in candidates:                            # descending -> biggest TM that fits
        est = (zn_bytes
               + 6 * tm * n * 4                      # (TM,N) f32/int32 live temps
               + 2 * tm * d_padded * zn_itemsize     # zt / zp slices
               + 1 * _MIB)
        if est <= budget:
            return tm, est
    raise NotImplementedError(
        "NT-Xent working set (resident zn + (TM,N) temps) does not fit VMEM; "
        "a column-streamed online-softmax variant is required.  # TODO(synk)")


# --------------------------------------------------------------------------
# Wrapper
# --------------------------------------------------------------------------
def nt_cross_entropy_loss(z_i, z_j, temperature: float, *,
                          matmul_dtype=jnp.bfloat16):
    """Pallas implementation of NTCrossEntropyLoss.forward.

    Returns (loss: f32 scalar, pred: int32 (2B,), targets: int32 (2B,)).
    """
    assert z_i.shape == z_j.shape and z_i.ndim == 2
    batch_size, d = z_i.shape
    n = 2 * batch_size

    # TODO(synk): fold this concat into the prologue (two ANY-space inputs +
    # manual DMA per half) to drop one more O(N*D) HBM round trip.
    z = jnp.concatenate([z_i, z_j], axis=0).astype(jnp.float32)   # (N, D)

    # Lane-dense padded feature dim; padding is written inside the prologue
    # (zeros change neither norms nor dot products), no separate jnp.pad copy.
    dp = d + ((-d) % 128)

    budget, vmem_limit = _vmem_budget_bytes()
    itemsize = jnp.dtype(matmul_dtype).itemsize
    block_m, est = _choose_block_m(batch_size, n, dp, itemsize, budget)
    num_tiles = n // block_m
    inv_sqrt_t = 1.0 / math.sqrt(float(temperature))

    # ---- prologue: normalize rows, fold in 1/sqrt(T), pad, cast to bf16 ----
    zn = pl.pallas_call(
        functools.partial(_l2norm_scale_pad_kernel, inv_sqrt_t=inv_sqrt_t, d=d),
        out_shape=jax.ShapeDtypeStruct((n, dp), matmul_dtype),
        grid=(num_tiles,),
        in_specs=[pl.BlockSpec((block_m, d), lambda i: (i, 0))],
        out_specs=pl.BlockSpec((block_m, dp), lambda i: (i, 0)),
        compiler_params=pltpu.CompilerParams(
            dimension_semantics=("parallel",)),
    )(z)

    # ---- main tiled kernel ----
    kernel = functools.partial(
        _ntxent_tile_kernel,
        temperature=float(temperature),
        batch_size=batch_size,
        block_m=block_m,
    )

    loss_rows, pred = pl.pallas_call(
        kernel,
        out_shape=(
            jax.ShapeDtypeStruct((n, 1), jnp.float32),
            jax.ShapeDtypeStruct((n, 1), jnp.int32),
        ),
        grid=(num_tiles,),
        in_specs=[
            # Resident RHS: constant block index => single buffer is enough.
            pl.BlockSpec((n, dp), lambda i: (0, 0),
                         pipeline_mode=pl.Buffered(1)),
        ],
        out_specs=(
            # (TM, 1) blocks: O(N) bytes total, kept column-shaped to avoid a
            # per-step sublane->lane relayout of the row-reduction results.
            pl.BlockSpec((block_m, 1), lambda i: (i, 0)),
            pl.BlockSpec((block_m, 1), lambda i: (i, 0)),
        ),
        compiler_params=pltpu.CompilerParams(
            dimension_semantics=("parallel",),
            vmem_limit_bytes=int(max(32 * _MIB, min(vmem_limit, est + 8 * _MIB))),
        ),
    )(zn)

    loss = jnp.mean(loss_rows[:, 0])

    # Targets are a fixed permutation constant (glue, no compute).
    targets = jnp.concatenate(
        [jnp.arange(batch_size, n, dtype=jnp.int32),
         jnp.arange(0, batch_size, dtype=jnp.int32)], axis=0)

    return loss, pred[:, 0], targets


# --------------------------------------------------------------------------
# Plain-JAX reference (mirrors the PyTorch module) for the self-check.
# --------------------------------------------------------------------------
def _reference(z_i, z_j, temperature):
    z = jnp.concatenate([z_i, z_j], axis=0).astype(jnp.float32)
    zn = z / jnp.linalg.norm(z, axis=-1, keepdims=True)
    sim = zn @ zn.T
    n = sim.shape[0]
    b = n // 2
    sim = sim - LARGE_NUM * jnp.eye(n, dtype=jnp.float32)
    logits = sim / temperature
    targets = jnp.concatenate([jnp.arange(b, n), jnp.arange(0, b)]).astype(jnp.int32)
    lse = jax.nn.logsumexp(logits, axis=-1)
    tgt = logits[jnp.arange(n), targets]
    loss = jnp.mean(lse - tgt)
    pred = jnp.argmax(logits, axis=-1).astype(jnp.int32)
    return loss, pred, targets, logits


if __name__ == "__main__":
    key = jax.random.PRNGKey(0)
    k1, k2 = jax.random.split(key)
    batch, hidden = 8, 32
    temperature = 0.5

    z_i = jax.random.normal(k1, (batch, hidden), dtype=jnp.float32)
    z_j = jax.random.normal(k2, (batch, hidden), dtype=jnp.float32)

    loss, pred, targets = nt_cross_entropy_loss(z_i, z_j, temperature)
    jax.block_until_ready((loss, pred, targets))

    # Sanity check against the plain-JAX f32 reference.  The kernel feeds the
    # MXU bf16 operands, so the loss tolerance is relaxed and the argmax check
    # is "hits a (near-)maximal f32 logit" rather than exact index equality.
    ref_loss, ref_pred, ref_targets, ref_logits = _reference(z_i, z_j, temperature)

    assert jnp.allclose(loss, ref_loss, rtol=2e-2, atol=2e-2), (loss, ref_loss)
    assert jnp.array_equal(targets, ref_targets)

    n = 2 * batch
    picked = ref_logits[jnp.arange(n), pred]
    row_max = jnp.max(ref_logits, axis=-1)
    assert bool(jnp.all(picked >= row_max - 5e-2)), (pred, ref_pred)
    assert bool(jnp.all(pred != jnp.arange(n)))   # diagonal is always masked out

    print("KERNEL_OK")
</pallas_src>

<mosaic_0001>
module attributes {stable_mosaic.version = 11 : i64} {
  func.func @_l2norm_scale_pad_kernel(%arg0: i32, %arg1: memref<8x32xf32, #tpu.memory_space<vmem>>, %arg2: memref<8x128xbf16, #tpu.memory_space<vmem>>) attributes {dimension_semantics = [#tpu.dimension_semantics<parallel>], iteration_bounds = array<i64: 2>, scalar_prefetch = 0 : i64, scratch_operands = 0 : i64, tpu.core_type = #tpu.core_type<tc>, window_params = [{transform_indices = @transform_0, window_bounds = array<i64: 8, 32>}, {transform_indices = @transform_1, window_bounds = array<i64: 8, 128>}]} {
    %c0 = arith.constant 0 : index
    %c0_0 = arith.constant 0 : index
    %0 = vector.load %arg1[%c0, %c0_0] : memref<8x32xf32, #tpu.memory_space<vmem>>, vector<8x32xf32>
    %1 = arith.mulf %0, %0 : vector<8x32xf32>
    %cst = arith.constant dense<0.000000e+00> : vector<8xf32>
    %2 = vector.multi_reduction <add>, %1, %cst [1] : vector<8x32xf32> to vector<8xf32>
    %3 = vector.shape_cast %2 : vector<8xf32> to vector<8x1xf32>
    %4 = math.sqrt %3 : vector<8x1xf32>
    %cst_1 = arith.constant 1.41421354 : f32
    %5 = vector.broadcast %cst_1 : f32 to vector<8x1xf32>
    %6 = arith.divf %5, %4 : vector<8x1xf32>
    %7 = vector.broadcast %6 : vector<8x1xf32> to vector<8x32xf32>
    %8 = arith.mulf %0, %7 : vector<8x32xf32>
    %9 = arith.truncf %8 : vector<8x32xf32> to vector<8x32xbf16>
    %cst_2 = arith.constant 0.000000e+00 : bf16
    %10 = vector.broadcast %cst_2 : bf16 to vector<8x128xbf16>
    %c0_3 = arith.constant 0 : index
    %c0_4 = arith.constant 0 : index
    %11 = vector.load %arg2[%c0_3, %c0_4] : memref<8x128xbf16, #tpu.memory_space<vmem>>, vector<8x128xbf16>
    tpu.vector_store %arg2[%c0_3, %c0_4], %10 {strides = array<i32>} : memref<8x128xbf16, #tpu.memory_space<vmem>>, vector<8x128xbf16>,
    %c0_5 = arith.constant 0 : index
    %c0_6 = arith.constant 0 : index
    %12 = vector.load %arg2[%c0_5, %c0_6] : memref<8x128xbf16, #tpu.memory_space<vmem>>, vector<8x32xbf16>
    tpu.vector_store %arg2[%c0_5, %c0_6], %9 {strides = array<i32>} : memref<8x128xbf16, #tpu.memory_space<vmem>>, vector<8x32xbf16>,
    return
  }
  func.func @transform_0(%arg0: i32) -> (i32, i32) {
    %c0_i32 = arith.constant 0 : i32
    %c0_i32_0 = arith.constant 0 : i32
    return %arg0, %c0_i32 : i32, i32
  }
  func.func @transform_1(%arg0: i32) -> (i32, i32) {
    %c0_i32 = arith.constant 0 : i32
    %c0_i32_0 = arith.constant 0 : i32
    return %arg0, %c0_i32 : i32, i32
  }
}

</mosaic_0001>

<llo_original>
// kernel: tpu_custom_call.1
$region0: #{tpu_custom_call.1}
  #allocation0 [shape = 'u32[]', space=smem, size = 0x4, offset = 0x4, fixed_abs, tag = 'smem constant byte address 0x4 - core index']
  #allocation1 [shape = 'u32[144,128]{1,0:T(1,128)}', space=vmem, size = 0x12000, scoped, tag = 'internal scratch']
  %s0 = inlined_call_operand.hbm [shape: f32[16,32], index: 0, kind: input, shape index: {}]
  %s1 = inlined_call_operand.hbm [shape: bf16[16,128], index: 1, kind: output, shape index: {}]
  %s2 = sld [smem:[#allocation0]]
  $region41: #{tpu_custom_call.1} parent=0
    _
  %s4 = ssub.s32 1, %s2
  %s5 = scalar_select 0, %s4, %s2
  $region1: #{tpu_custom_call.1} parent=0
    #allocation2 [shape = 'u8[8192]{0}', space=vmem, size = 0x2000, scoped, tag = 'input window, operand 0']
    #allocation3 [shape = 's32[2]{0}', space=sflag, size = 0x8, scoped, tag = 'scoped memory for tpu_custom_call.1']
    #allocation4 [shape = 's32[2]{0}', space=sflag, size = 0x8, scoped, tag = 'scoped memory for tpu_custom_call.1']
    #allocation5 [shape = 'u8[4096]{0}', space=vmem, size = 0x1000, scoped, tag = 'output window, operand 0']
    %6 = vsyncpa [#allocation3], 0
    %s7 = scalar_lea.sflag [#allocation3], 1
    %8 = vsyncpa %s7, 0
    %9 = vsyncpa [#allocation4], 0
    %s10 = scalar_lea.sflag [#allocation4], 1
    %11 = vsyncpa %s10, 0
    loop: start=0, step=1, limit=4
    $region2: #{tpu_custom_call.1} parent=1 // loop_pre_header
      _
    $region3: #{tpu_custom_call.1} parent=1 // loop_header
      %s13 = sphi 0, %s17
      %p14 = scmp.ge.s32.totalorder %s13, 4
      %s23 = sphi 0, %s25
      %s26 = sphi 0, %s23
      %s27 = sphi 0, %s26
      %s43 = sphi 0, %s27
      %s49 = sphi 0, %s51
      %s52 = sphi 0, %s49
      %s53 = sphi 0, %s52
      %s69 = sphi 0, %s53
    $region4: #{tpu_custom_call.1} parent=1 // loop_header_branch
      %16 = sbr.rel (%p14) target = $region8
    $region5: #{tpu_custom_call.1} parent=1 // loop_body
      %s18 = ssub.s32 %s13, 1
      %s19 = ssub.s32 %s13, 2
      %s20 = sadd.s32 %s13, 1
      %s21 = ssub.s32 %s13, %s20
      %p22 = scmp.eq.s32.totalorder %s21, 0
      %s24 = sadd.s32 %s23, 1
      %s25 = scalar_select %p22, %s23, %s24
      %p28 = pneg %p22
      %p29 = scmp.eq.s32.totalorder %s13, 1
      %p30 = por %p28, %p29
      %p31 = scmp.ne.s32.totalorder %s23, %s26
      %p32 = scmp.eq.s32.totalorder %s13, 0
      %p33 = por %p31, %p32
      %p34 = scmp.ne.s32.totalorder %s23, %s26
      %p35 = scmp.eq.s32.totalorder %s18, 1
      %p36 = por %p34, %p35
      %p37 = scmp.ne.s32.totalorder %s26, %s27
      %p38 = scmp.eq.s32.totalorder %s18, 0
      %p39 = por %p37, %p38
      %p40 = scmp.ne.s32.totalorder %s26, %s27
      %p41 = scmp.eq.s32.totalorder %s19, 1
      %p42 = por %p40, %p41
      %p44 = scmp.ne.s32.totalorder %s27, %s43
      %p45 = scmp.eq.s32.totalorder %s19, 0
      %p46 = por %p44, %p45
      %s47 = ssub.s32 %s13, %s20
      %p48 = scmp.eq.s32.totalorder %s47, 0
      %s50 = sadd.s32 %s49, 1
      %s51 = scalar_select %p48, %s49, %s50
      %p54 = pneg %p48
      %p55 = scmp.eq.s32.totalorder %s13, 1
      %p56 = por %p54, %p55
      %p57 = scmp.ne.s32.totalorder %s49, %s52
      %p58 = scmp.eq.s32.totalorder %s13, 0
      %p59 = por %p57, %p58
      %p60 = scmp.ne.s32.totalorder %s49, %s52
      %p61 = scmp.eq.s32.totalorder %s18, 1
      %p62 = por %p60, %p61
      %p63 = scmp.ne.s32.totalorder %s52, %s53
      %p64 = scmp.eq.s32.totalorder %s18, 0
      %p65 = por %p63, %p64
      %p66 = scmp.ne.s32.totalorder %s52, %s53
      %p67 = scmp.eq.s32.totalorder %s19, 1
      %p68 = por %p66, %p67
      %p70 = scmp.ne.s32.totalorder %s53, %s69
      %p71 = scmp.eq.s32.totalorder %s19, 0
      %p72 = por %p70, %p71
      %p73 = scmp.le.s32.totalorder 1, %s13
      %p74 = scmp.lt.s32.totalorder %s13, 3
      %p75 = pnand %p73, %p74
      %p76 = pneg %p75
      // Predicated region
      $region9: #{tpu_custom_call.1} parent=5 // pred_check
        _
      $region10: #{tpu_custom_call.1} parent=5 // pred_check_branch
        %78 = sbr.rel (%p75) target = $region12
      $region11: #{tpu_custom_call.1} parent=5 // pred_region
        %s79 = ssub.s32 %s13, 1
      $region12: #{tpu_custom_call.1} parent=5 // pred_fallthru
        _
      %p80 = scmp.lt.s32.totalorder %s13, 2
      // Predicated region
      $region13: #{tpu_custom_call.1} parent=5 // pred_check
        %p81 = pneg %p80
      $region14: #{tpu_custom_call.1} parent=5 // pred_check_branch
        %83 = sbr.rel (%p81) target = $region16
      $region15: #{tpu_custom_call.1} parent=5 // pred_region
        // Predicated region
        $region17: #{tpu_custom_call.1} parent=15 // pred_check
          %p84 = pneg %p33
        $region18: #{tpu_custom_call.1} parent=15 // pred_check_branch
          %86 = sbr.rel (%p84) target = $region20
        $region19: #{tpu_custom_call.1} parent=15 // pred_region
          %s87 = sand.u32 %s23, 1
          %s88 = scalar_lea.sflag [#allocation3], %s87
          %s89 = sand.u32 %s23, 1
          %s90 = smul.addr %s89, 8
          %s91 = scalar_lea.vmem [#allocation2], %s90
          %s93 = ssub.s32 128, 128
          %94 = vsyncadd %s88, %s93
          %s95 = smul.addr %s13, 128
          %s96 = scalar_lea.hbm %s0, %s95
          %s98 = sshll.u32 %s91, 4
          %s99 = int_to_ptr.vmem [resolvable:$true] %s98
          %101 = dma.hbm_to_vmem [thread:$0]  %s96, 128, %s99, %s88
        $region20: #{tpu_custom_call.1} parent=15 // pred_fallthru
          _
      $region16: #{tpu_custom_call.1} parent=5 // pred_fallthru
        _
      %p102 = scmp.le.s32.totalorder 1, %s13
      %p103 = scmp.lt.s32.totalorder %s13, 3
      %p104 = pnand %p102, %p103
      %p105 = pneg %p104
      // Predicated region
      $region21: #{tpu_custom_call.1} parent=5 // pred_check
        _
      $region22: #{tpu_custom_call.1} parent=5 // pred_check_branch
        %107 = sbr.rel (%p104) target = $region24
      $region23: #{tpu_custom_call.1} parent=5 // pred_region
        %s108 = ssub.s32 %s13, 1
        %s109 = sand.u32 %s26, 1
        %s110 = scalar_lea.sflag [#allocation3], %s109
        %s111 = sand.u32 %s26, 1
        %s112 = smul.addr %s111, 8
        %s113 = scalar_lea.vmem [#allocation2], %s112
        // Predicated region
        $region25: #{tpu_custom_call.1} parent=23 // pred_check
          %p114 = pneg %p39
        $region26: #{tpu_custom_call.1} parent=23 // pred_check_branch
          %116 = sbr.rel (%p114) target = $region28
        $region27: #{tpu_custom_call.1} parent=23 // pred_region
          %117 = dma.done %s110, 128
        $region28: #{tpu_custom_call.1} parent=23 // pred_fallthru
          _
        %s118 = sand.u32 %s26, 1
        %s119 = scalar_lea.sflag [#allocation3], %s118
        %s120 = sand.u32 %s26, 1
        %s121 = smul.addr %s120, 8
        %s122 = scalar_lea.vmem [#allocation2], %s121
        %p123 = pneg %p39
        %p124 = pneg %p36
        %p125 = pneg %p65
        %p126 = pneg %p62
        %s127 = sand.u32 %s52, 1
        %s128 = scalar_lea.sflag [#allocation4], %s127
        %s129 = sand.u32 %s52, 1
        %s130 = smul.addr %s129, 4
        %s131 = scalar_lea.vmem [#allocation5], %s130
        %v133 = vld [vmem:[%s113] sm:$0xff]
        %v134 = vmul.f32 %v133, %v133
        %vm135 = vcmask 261120
        %v136 = vsel %vm135, %v134, 0.0
        %137 = vadd.xlane.f32.xlu0 %v136
        %v138 = vpop.xlane.xlu0 %137
        %v139 = vrsqrt.pop %v138
        %v140 = vmul.f32 %v138, %v139
        %vm141 = vcmp.eq.f32.partialorder %v138, inf
        %v142 = vsel %vm141, %v138, %v140
        %vm143 = vcmp.eq.f32.partialorder %v138, 0.0
        %v144 = vand.u32 %v138, 2147483648
        %v145 = vsel %vm143, %v144, %v142
        %v146 = vrcp.pop %v145
        %v147 = vmul.f32 1.4142135, %v146
        %v148 = vmul.f32 %v133, %v147
        %v149 = vpack.c.bf16 %v148, %v148
        %150 = vst [vmem:[%s131] sm:$0xf] 0
        %vm151 = vcmask 257024
        %152 = vst.msk [vmem:[%s131] sm:$0xf] %vm151, %v149
        %s153 = sand.u32 %s52, 1
        %s154 = scalar_lea.sflag [#allocation4], %s153
        %s155 = sand.u32 %s52, 1
        %s156 = smul.addr %s155, 4
        %s157 = scalar_lea.vmem [#allocation5], %s156
        // Predicated region
        $region29: #{tpu_custom_call.1} parent=23 // pred_check
          %p158 = pneg %p62
        $region30: #{tpu_custom_call.1} parent=23 // pred_check_branch
          %160 = sbr.rel (%p158) target = $region32
        $region31: #{tpu_custom_call.1} parent=23 // pred_region
          %s162 = ssub.s32 64, 64
          %163 = vsyncadd %s154, %s162
          %s164 = smul.addr %s18, 64
          %s165 = scalar_lea.hbm %s1, %s164
          %s167 = sshll.u32 %s157, 4
          %s168 = int_to_ptr.vmem [resolvable:$true] %s167
          %170 = dma.vmem_to_hbm [thread:$0]  %s168, 64, %s165, %s154
        $region32: #{tpu_custom_call.1} parent=23 // pred_fallthru
          _
      $region24: #{tpu_custom_call.1} parent=5 // pred_fallthru
        _
      %p171 = scmp.le.s32.totalorder 2, %s13
      // Predicated region
      $region33: #{tpu_custom_call.1} parent=5 // pred_check
        %p172 = pneg %p171
      $region34: #{tpu_custom_call.1} parent=5 // pred_check_branch
        %174 = sbr.rel (%p172) target = $region36
      $region35: #{tpu_custom_call.1} parent=5 // pred_region
        %s175 = ssub.s32 %s13, 2
        // Predicated region
        $region37: #{tpu_custom_call.1} parent=35 // pred_check
          %p176 = pneg %p68
        $region38: #{tpu_custom_call.1} parent=35 // pred_check_branch
          %178 = sbr.rel (%p176) target = $region40
        $region39: #{tpu_custom_call.1} parent=35 // pred_region
          %s179 = sand.u32 %s53, 1
          %s180 = scalar_lea.sflag [#allocation4], %s179
          %s181 = sand.u32 %s53, 1
          %s182 = smul.addr %s181, 4
          %s183 = scalar_lea.vmem [#allocation5], %s182
          %184 = dma.done %s180, 64
        $region40: #{tpu_custom_call.1} parent=35 // pred_fallthru
          _
      $region36: #{tpu_custom_call.1} parent=5 // pred_fallthru
        _
    $region6: #{tpu_custom_call.1} parent=1 // loop_footer
      %s17 = sadd.s32 1, %s13
    $region7: #{tpu_custom_call.1} parent=1 // loop_footer_branch
      %12 = sbr.rel target = $region3
    $region8: #{tpu_custom_call.1} parent=1 // loop_exit
      _
    %185 = vsyncpa [#allocation3], 1
    %s186 = scalar_lea.sflag [#allocation3], 1
    %187 = vsyncpa %s186, 1
    %188 = vsyncpa [#allocation4], 1
    %s189 = scalar_lea.sflag [#allocation4], 1
    %190 = vsyncpa %s189, 1

</llo_original>
